<compile_context>
chip_gen: v5e
topology: v5e:2x2
jax: 0.10.0
libtpu: 0.0.40
codegen_flags: <defaults>
</compile_context>

<pallas_src>
import jax
import jax.numpy as jnp
from jax.experimental import pallas as pl
from jax.experimental.pallas import tpu as pltpu


def _round_up(x, m):
    return ((x + m - 1) // m) * m


def _vmem_capacity_bytes():
    try:
        cap = getattr(pltpu.get_tpu_info(), "vmem_capacity_bytes", None)
        if cap:
            return int(cap)
    except Exception:
        pass
    return 64 * 1024 * 1024  # v7x-safe fallback


# ----------------------- grouping glue (plain JAX) -----------------------

def square_distance(src, dst):
    # src [B,N,C], dst [B,M,C] -> [B,N,M]
    # HIGHEST precision: avoids bf16-pass cancellation flipping ball-query
    # membership near the radius boundary vs the f32 PyTorch reference.
    dist = -2.0 * jnp.einsum(
        "bnc,bmc->bnm", src, dst, precision=jax.lax.Precision.HIGHEST
    )
    dist = dist + jnp.sum(src ** 2, -1)[:, :, None]
    dist = dist + jnp.sum(dst ** 2, -1)[:, None, :]
    return dist


def farthest_point_sample(xyz, npoint):
    # xyz [B,N,3] -> centroids [B,npoint] (int32)
    # TODO(synk): deterministic start index 0 (PyTorch reference uses a random start).
    B, N, _ = xyz.shape

    def body(i, state):
        centroids, distance, farthest = state
        centroids = centroids.at[:, i].set(farthest)
        centroid = jnp.take_along_axis(xyz, farthest[:, None, None], axis=1)  # [B,1,3]
        dist = jnp.sum((xyz - centroid) ** 2, -1)                             # [B,N]
        distance = jnp.minimum(distance, dist)
        farthest = jnp.argmax(distance, -1).astype(jnp.int32)
        return centroids, distance, farthest

    init = (
        jnp.zeros((B, npoint), jnp.int32),
        jnp.full((B, N), 1e10, jnp.float32),
        jnp.zeros((B,), jnp.int32),
    )
    centroids, _, _ = jax.lax.fori_loop(0, npoint, body, init)
    return centroids


def index_points(points, idx):
    # points [B,N,C], idx [B,...] -> [B,...,C]
    return jax.vmap(lambda p, i: p[i])(points, idx)


def query_ball_point(radius, nsample, xyz, new_xyz):
    B, N, _ = xyz.shape
    S = new_xyz.shape[1]
    sqrdists = square_distance(new_xyz, xyz)                                  # [B,S,N]
    group_idx = jnp.broadcast_to(
        jnp.arange(N, dtype=jnp.int32)[None, None, :], (B, S, N)
    )
    group_idx = jnp.where(sqrdists > radius ** 2, N, group_idx)
    group_idx = jnp.sort(group_idx, axis=-1)[:, :, :nsample]                  # [B,S,K]
    group_first = jnp.broadcast_to(group_idx[:, :, :1], group_idx.shape)
    group_idx = jnp.where(group_idx == N, group_first, group_idx)
    return group_idx


def sample_and_group(npoint, radius, nsample, xyz, points):
    # xyz [B,N,3], points [B,N,D] or None
    fps_idx = farthest_point_sample(xyz, npoint)                              # [B,S]
    new_xyz = index_points(xyz, fps_idx)                                      # [B,S,3]
    idx = query_ball_point(radius, nsample, xyz, new_xyz)                     # [B,S,K]
    grouped_xyz = index_points(xyz, idx)                                      # [B,S,K,3]
    grouped_xyz_norm = grouped_xyz - new_xyz[:, :, None, :]
    if points is not None:
        grouped_points = index_points(points, idx)                            # [B,S,K,D]
        new_points = jnp.concatenate([grouped_xyz_norm, grouped_points], axis=-1)
    else:
        new_points = grouped_xyz_norm
    return new_xyz, new_points


def sample_and_group_all(xyz, points):
    B, N, C = xyz.shape
    new_xyz = jnp.zeros((B, 1, C), xyz.dtype)
    grouped_xyz = xyz[:, None, :, :]
    if points is not None:
        new_points = jnp.concatenate([grouped_xyz, points[:, None, :, :]], axis=-1)
    else:
        new_points = grouped_xyz
    return new_xyz, new_points


# ----------------------- Pallas kernel: fused MLP + max-pool -----------------------

def _make_mlp_max_kernel(num_layers, tile_s, k):
    def kernel(x_ref, *rest):
        # x_ref: [tile_s*k, Cin_pad] bf16 (already flat matmul operand layout)
        # rest = (w0, b0, w1, b1, ..., out_ref); w: bf16 [Cl, Cl+1], b: f32 [1, Cl+1]
        out_ref = rest[-1]
        params = rest[:-1]
        h = x_ref[...]
        for l in range(num_layers):
            w = params[2 * l][...]                      # bf16 [Cl, Cl+1]
            bi = params[2 * l + 1][...]                 # f32  [1, Cl+1]
            acc = jnp.dot(h, w, preferred_element_type=jnp.float32)
            if l + 1 < num_layers:
                # per-point bias + ReLU in f32 (VPU-safe on v5e); bf16 only at
                # matmul operands; widths are 128-padded -> lane-dense vregs.
                h = jnp.maximum(acc + bi, 0.0).astype(jnp.bfloat16)
            else:
                # Last layer: max-pool over K *before* bias + ReLU (exact: bias is
                # constant over K and ReLU is monotone) -> K-fold less epilogue work.
                pooled = jnp.max(acc.reshape(tile_s, k, acc.shape[-1]), axis=1)
                out_ref[...] = jnp.maximum(pooled + bi, 0.0).astype(out_ref.dtype)
    return kernel


def _choose_tile_s(m_groups, k, cin, widths, vmem_cap):
    """Groups per grid step: target ~1024 flattened matmul rows, bounded by a
    live-VMEM estimate (double-buffered I/O blocks + params x2 + f32 acc + bf16 h)."""
    c_max = max([cin] + list(widths))
    cout = widths[-1]
    param_bytes = 0
    last = cin
    for c in widths:
        param_bytes += last * c * 2 + c * 4
        last = c
    param_bytes *= 2                                    # pipeline keeps 2 buffers/param
    budget = max(2 << 20, min(8 << 20, vmem_cap // 8))

    def live(ts):
        tm = ts * k
        io = 2 * (tm * cin * 2 + ts * cout * 2)         # double-buffered bf16 in/out blocks
        inter = tm * c_max * 4 + tm * c_max * 2         # f32 acc + bf16 next operand
        return io + inter + param_bytes

    if m_groups <= 16:
        # Single full-extent block (block dims == array dims -> no alignment issue).
        # TODO(synk): K-chunked in-kernel reduction for extreme group_all sizes.
        return m_groups
    target = max(16, min(m_groups, max(1, 1024 // k)))
    ts = 16                                             # multiple of 16: bf16-out sublane safe
    while ts * 2 <= target and live(ts * 2) <= budget:
        ts *= 2
    return ts


def pointnet_mlp_max(grouped, weights, biases, out_channels, vmem_cap):
    """grouped: [B, S, K, Cin_pad] bf16 -> pooled features [B, S, out_channels] bf16."""
    B, S, K, Cin = grouped.shape
    num_layers = len(weights)
    widths = [int(w.shape[1]) for w in weights]
    Cout_pad = widths[-1]

    # K multiple of 8 so the (tile_m, C) -> (tile_s, K, C) pool split is sublane-tile
    # aligned; pad by repeating each group's first sample (exact under max-pool).
    K_pad = _round_up(K, 8)
    if K_pad != K:
        rep = jnp.broadcast_to(grouped[:, :, :1, :], (B, S, K_pad - K, Cin))
        grouped = jnp.concatenate([grouped, rep], axis=2)
        K = K_pad

    # Flatten (B, S) into one group axis: even TC split on v7x, one global tail pad.
    M = B * S
    grouped = grouped.reshape(M, K, Cin)

    TILE_S = _choose_tile_s(M, K, Cin, widths, vmem_cap)
    M_pad = _round_up(M, TILE_S)
    if M_pad != M:
        grouped = jnp.pad(grouped, ((0, M_pad - M), (0, 0), (0, 0)))

    # Wrapper-side flatten to the 2-D matmul operand layout: the kernel never
    # reshapes a narrow-lane 3-D block.
    x2d = grouped.reshape(M_pad * K, Cin)

    kernel = _make_mlp_max_kernel(num_layers, TILE_S, K)

    in_specs = [pl.BlockSpec((TILE_S * K, Cin), lambda i: (i, 0))]
    params = []
    for w, bi in zip(weights, biases):
        # Constant block index across the whole grid -> DMA'd once, resident in VMEM.
        in_specs.append(pl.BlockSpec(w.shape, lambda i: (0, 0)))
        in_specs.append(pl.BlockSpec(bi.shape, lambda i: (0, 0)))
        params.extend([w, bi])

    last = Cin
    mm_flops = 0
    for c in widths:
        mm_flops += 2 * M_pad * K * last * c
        last = c
    bytes_accessed = (
        x2d.size * x2d.dtype.itemsize
        + sum(int(p.size) * p.dtype.itemsize for p in params)
        + M_pad * Cout_pad * 2
    )

    # Chip-aware scoped VMEM: ~48 MiB on v7x (64 MiB physical), 96 MiB on v5e/v6e.
    vmem_limit = int(min(96 << 20, max(32 << 20, (vmem_cap * 3) // 4)))

    out = pl.pallas_call(
        kernel,
        out_shape=jax.ShapeDtypeStruct((M_pad, Cout_pad), jnp.bfloat16),
        grid=(M_pad // TILE_S,),
        in_specs=in_specs,
        out_specs=pl.BlockSpec((TILE_S, Cout_pad), lambda i: (i, 0)),
        compiler_params=pltpu.CompilerParams(
            dimension_semantics=("parallel",),
            vmem_limit_bytes=vmem_limit,
        ),
        cost_estimate=pl.CostEstimate(
            flops=int(mm_flops), transcendentals=0, bytes_accessed=int(bytes_accessed)
        ),
    )(x2d, *params)

    return out[:M, :out_channels].reshape(B, S, out_channels)


# ----------------------- module wrapper -----------------------

class PointNetSetAbstraction:
    def __init__(self, npoint, radius, nsample, in_channel, mlp, group_all, key):
        self.npoint = npoint
        self.radius = radius
        self.nsample = nsample
        self.group_all = group_all
        self.in_channel = in_channel
        self.out_channel = mlp[-1]
        self._vmem_cap = _vmem_capacity_bytes()
        eps = 1e-5

        # Padded channel widths: input contraction dim -> multiple of 8 (sublane tile,
        # keeps HBM traffic minimal); every MLP width -> multiple of 128 (lane-dense
        # intermediate activations and output stores; free on the MXU for N,K <= 128).
        self._cin_pad = _round_up(in_channel, 8)
        pad_outs = [_round_up(c, 128) for c in mlp]

        # TODO(synk): BatchNorm is eval-mode (running stats folded into weight/bias);
        # training-mode batch statistics are not recomputed per forward call.
        self.weights = []   # bf16 [Cin_pad_l, Cout_pad_l], BN scale folded in
        self.biases = []    # f32  [1, Cout_pad_l], conv bias + BN shift folded in
        last, last_pad = in_channel, self._cin_pad
        for out_channel, out_pad in zip(mlp, pad_outs):
            key, k1, k2, k3, k4 = jax.random.split(key, 5)
            bound = 1.0 / (last ** 0.5)
            w = jax.random.uniform(k1, (last, out_channel), jnp.float32, -bound, bound)
            b = jax.random.uniform(k2, (out_channel,), jnp.float32, -bound, bound)
            gamma = jnp.ones((out_channel,), jnp.float32)
            beta = jnp.zeros((out_channel,), jnp.float32)
            running_mean = 0.1 * jax.random.normal(k3, (out_channel,), jnp.float32)
            running_var = 1.0 + 0.1 * jnp.abs(
                jax.random.normal(k4, (out_channel,), jnp.float32)
            )
            scale = gamma / jnp.sqrt(running_var + eps)
            shift = beta + (b - running_mean) * scale
            w_folded = w * scale[None, :]                 # exact fold of BN scale
            w_pad = jnp.zeros((last_pad, out_pad), jnp.float32)
            w_pad = w_pad.at[:last, :out_channel].set(w_folded)
            b_pad = jnp.zeros((1, out_pad), jnp.float32)
            b_pad = b_pad.at[0, :out_channel].set(shift)
            self.weights.append(w_pad.astype(jnp.bfloat16))
            self.biases.append(b_pad)
            last, last_pad = out_channel, out_pad

    def __call__(self, xyz, points):
        # xyz: [B, 3, N], points: [B, D, N] or None
        xyz_t = jnp.transpose(xyz, (0, 2, 1))                                 # [B,N,3]
        points_t = jnp.transpose(points, (0, 2, 1)) if points is not None else None
        if self.group_all:
            new_xyz, new_points = sample_and_group_all(xyz_t, points_t)
        else:
            new_xyz, new_points = sample_and_group(
                self.npoint, self.radius, self.nsample, xyz_t, points_t
            )
        B, S, K, cin = new_points.shape
        # Pad Cin to a multiple of 8 (zero columns; exact) and carry bf16 into the kernel.
        if cin != self._cin_pad:
            new_points = jnp.pad(
                new_points, ((0, 0), (0, 0), (0, 0), (0, self._cin_pad - cin))
            )
        grouped = new_points.astype(jnp.bfloat16)
        feat = pointnet_mlp_max(
            grouped, self.weights, self.biases, self.out_channel, self._vmem_cap
        )                                                                     # [B,S,Cout] bf16
        new_points_out = jnp.transpose(feat, (0, 2, 1)).astype(jnp.float32)   # [B,Cout,S]
        new_xyz_out = jnp.transpose(new_xyz, (0, 2, 1))                       # [B,3,S]
        return new_xyz_out, new_points_out


# ----------------------- demo -----------------------

if __name__ == "__main__":
    key = jax.random.PRNGKey(0)
    k_xyz, k_pts, k_params = jax.random.split(key, 3)

    B, N, D = 2, 64, 4            # batch, points, extra feature channels
    npoint, radius, nsample = 16, 0.4, 8
    mlp = [32, 64]
    in_channel = D + 3            # grouped features are [local xyz | point features]

    xyz = jax.random.normal(k_xyz, (B, 3, N), jnp.float32)
    points = jax.random.normal(k_pts, (B, D, N), jnp.float32)

    module = PointNetSetAbstraction(
        npoint, radius, nsample, in_channel, mlp, group_all=False, key=k_params
    )
    fwd = jax.jit(lambda x, p: module(x, p))
    new_xyz, new_points = fwd(xyz, points)
    jax.block_until_ready((new_xyz, new_points))

    assert new_xyz.shape == (B, 3, npoint)
    assert new_points.shape == (B, mlp[-1], npoint)
    print("KERNEL_OK")
</pallas_src>

<mosaic_0001>
module attributes {stable_mosaic.version = 11 : i64} {
  func.func @kernel(%arg0: i32, %arg1: memref<256x8xbf16, #tpu.memory_space<vmem>>, %arg2: memref<8x128xbf16, #tpu.memory_space<vmem>>, %arg3: memref<1x128xf32, #tpu.memory_space<vmem>>, %arg4: memref<128x128xbf16, #tpu.memory_space<vmem>>, %arg5: memref<1x128xf32, #tpu.memory_space<vmem>>, %arg6: memref<32x128xbf16, #tpu.memory_space<vmem>>) attributes {dimension_semantics = [#tpu.dimension_semantics<parallel>], iteration_bounds = array<i64: 1>, scalar_prefetch = 0 : i64, scratch_operands = 0 : i64, tpu.core_type = #tpu.core_type<tc>, window_params = [{transform_indices = @transform_0, window_bounds = array<i64: 256, 8>}, {pipeline_mode = #tpu.pipeline_mode<synchronous>, transform_indices = @transform_1, window_bounds = array<i64: 8, 128>}, {pipeline_mode = #tpu.pipeline_mode<synchronous>, transform_indices = @transform_2, window_bounds = array<i64: 1, 128>}, {pipeline_mode = #tpu.pipeline_mode<synchronous>, transform_indices = @transform_3, window_bounds = array<i64: 128, 128>}, {pipeline_mode = #tpu.pipeline_mode<synchronous>, transform_indices = @transform_4, window_bounds = array<i64: 1, 128>}, {transform_indices = @transform_5, window_bounds = array<i64: 32, 128>}]} {
    %c0 = arith.constant 0 : index
    %c0_0 = arith.constant 0 : index
    %0 = vector.load %arg1[%c0, %c0_0] : memref<256x8xbf16, #tpu.memory_space<vmem>>, vector<256x8xbf16>
    %c0_1 = arith.constant 0 : index
    %c0_2 = arith.constant 0 : index
    %1 = vector.load %arg2[%c0_1, %c0_2] : memref<8x128xbf16, #tpu.memory_space<vmem>>, vector<8x128xbf16>
    %c0_3 = arith.constant 0 : index
    %c0_4 = arith.constant 0 : index
    %2 = vector.load %arg3[%c0_3, %c0_4] : memref<1x128xf32, #tpu.memory_space<vmem>>, vector<1x128xf32>
    %cst = arith.constant dense<0.000000e+00> : vector<256x128xf32>
    %3 = tpu.matmul %0, %1, %cst {dimension_numbers = #tpu.dot_dimension_numbers<[1], [0], [0], [1], [0, 0, 1, 1], [], []>} : vector<256x8xbf16>, vector<8x128xbf16>, vector<256x128xf32> -> vector<256x128xf32>
    %4 = vector.broadcast %2 : vector<1x128xf32> to vector<256x128xf32>
    %5 = arith.addf %3, %4 : vector<256x128xf32>
    %cst_5 = arith.constant 0.000000e+00 : f32
    %6 = vector.broadcast %cst_5 : f32 to vector<256x128xf32>
    %7 = arith.maximumf %5, %6 : vector<256x128xf32>
    %8 = arith.truncf %7 : vector<256x128xf32> to vector<256x128xbf16>
    %c0_6 = arith.constant 0 : index
    %c0_7 = arith.constant 0 : index
    %9 = vector.load %arg4[%c0_6, %c0_7] : memref<128x128xbf16, #tpu.memory_space<vmem>>, vector<128x128xbf16>
    %c0_8 = arith.constant 0 : index
    %c0_9 = arith.constant 0 : index
    %10 = vector.load %arg5[%c0_8, %c0_9] : memref<1x128xf32, #tpu.memory_space<vmem>>, vector<1x128xf32>
    %cst_10 = arith.constant dense<0.000000e+00> : vector<256x128xf32>
    %11 = tpu.matmul %8, %9, %cst_10 {dimension_numbers = #tpu.dot_dimension_numbers<[1], [0], [0], [1], [0, 0, 1, 1], [], []>} : vector<256x128xbf16>, vector<128x128xbf16>, vector<256x128xf32> -> vector<256x128xf32>
    %12 = vector.shape_cast %11 : vector<256x128xf32> to vector<32x8x128xf32>
    %cst_11 = arith.constant dense<0xFF800000> : vector<32x128xf32>
    %13 = vector.multi_reduction <maximumf>, %12, %cst_11 [1] : vector<32x8x128xf32> to vector<32x128xf32>
    %14 = vector.broadcast %10 : vector<1x128xf32> to vector<32x128xf32>
    %15 = arith.addf %13, %14 : vector<32x128xf32>
    %cst_12 = arith.constant 0.000000e+00 : f32
    %16 = vector.broadcast %cst_12 : f32 to vector<32x128xf32>
    %17 = arith.maximumf %15, %16 : vector<32x128xf32>
    %18 = arith.truncf %17 : vector<32x128xf32> to vector<32x128xbf16>
    %c0_13 = arith.constant 0 : index
    %c0_14 = arith.constant 0 : index
    %19 = vector.load %arg6[%c0_13, %c0_14] : memref<32x128xbf16, #tpu.memory_space<vmem>>, vector<32x128xbf16>
    tpu.vector_store %arg6[%c0_13, %c0_14], %18 {strides = array<i32>} : memref<32x128xbf16, #tpu.memory_space<vmem>>, vector<32x128xbf16>,
    return
  }
  func.func @transform_0(%arg0: i32) -> (i32, i32) {
    %c0_i32 = arith.constant 0 : i32
    %c0_i32_0 = arith.constant 0 : i32
    return %arg0, %c0_i32 : i32, i32
  }
  func.func @transform_1(%arg0: i32) -> (i32, i32) {
    %c0_i32 = arith.constant 0 : i32
    %c0_i32_0 = arith.constant 0 : i32
    %c0_i32_1 = arith.constant 0 : i32
    return %c0_i32, %c0_i32_0 : i32, i32
  }
  func.func @transform_2(%arg0: i32) -> (i32, i32) {
    %c0_i32 = arith.constant 0 : i32
    %c0_i32_0 = arith.constant 0 : i32
    %c0_i32_1 = arith.constant 0 : i32
    return %c0_i32, %c0_i32_0 : i32, i32
  }
  func.func @transform_3(%arg0: i32) -> (i32, i32) {
    %c0_i32 = arith.constant 0 : i32
    %c0_i32_0 = arith.constant 0 : i32
    %c0_i32_1 = arith.constant 0 : i32
    return %c0_i32, %c0_i32_0 : i32, i32
  }
  func.func @transform_4(%arg0: i32) -> (i32, i32) {
    %c0_i32 = arith.constant 0 : i32
    %c0_i32_0 = arith.constant 0 : i32
    %c0_i32_1 = arith.constant 0 : i32
    return %c0_i32, %c0_i32_0 : i32, i32
  }
  func.func @transform_5(%arg0: i32) -> (i32, i32) {
    %c0_i32 = arith.constant 0 : i32
    %c0_i32_0 = arith.constant 0 : i32
    return %arg0, %c0_i32 : i32, i32
  }
}

</mosaic_0001>

<llo_original>
// kernel: custom-call.8
$region0: #{custom-call.8}
  %s0 = inlined_call_operand.vmem [shape: f32[2,64], index: 0, kind: output, shape index: {}]

// kernel: _lambda_.1
$region0: #{_lambda_.1}
  #allocation0 [shape = 'u32[]', space=smem, size = 0x4, offset = 0x4, fixed_abs, tag = 'smem constant byte address 0x4 - core index']
  #allocation1 [shape = 'u32[72,128]{1,0:T(1,128)}', space=vmem, size = 0x9000, scoped, tag = 'internal scratch']
  %s0 = inlined_call_operand.vmem [shape: bf16[256,8], index: 0, kind: input, shape index: {}]
  %s1 = inlined_call_operand.vmem [shape: bf16[8,128], index: 1, kind: input, shape index: {}]
  %s2 = inlined_call_operand.vmem [shape: f32[1,128], index: 2, kind: input, shape index: {}]
  %s3 = inlined_call_operand.vmem [shape: bf16[128,128], index: 3, kind: input, shape index: {}]
  %s4 = inlined_call_operand.vmem [shape: f32[1,128], index: 4, kind: input, shape index: {}]
  %s5 = inlined_call_operand.vmem [shape: bf16[32,128], index: 5, kind: output, shape index: {}]
  %s6 = sld [smem:[#allocation0]]
  $region30: #{_lambda_.1} parent=0
    _
  %s8 = ssub.s32 1, %s6
  %s9 = scalar_select 0, %s8, %s6
  // Predicated region
  $region2: #{_lambda_.1} parent=0 // pred_check
    _
  $region3: #{_lambda_.1} parent=0 // pred_check_branch
    %11 = sbr.rel (0) target = $region5
  $region4: #{_lambda_.1} parent=0 // pred_region
    _
  $region5: #{_lambda_.1} parent=0 // pred_fallthru
    _
  // Predicated region
  $region6: #{_lambda_.1} parent=0 // pred_check
    _
  $region7: #{_lambda_.1} parent=0 // pred_check_branch
    %13 = sbr.rel (0) target = $region9
  $region8: #{_lambda_.1} parent=0 // pred_region
    _
  $region9: #{_lambda_.1} parent=0 // pred_fallthru
    _
  // Predicated region
  $region10: #{_lambda_.1} parent=0 // pred_check
    _
  $region11: #{_lambda_.1} parent=0 // pred_check_branch
    %15 = sbr.rel (0) target = $region13
  $region12: #{_lambda_.1} parent=0 // pred_region
    _
  $region13: #{_lambda_.1} parent=0 // pred_fallthru
    _
  // Predicated region
  $region14: #{_lambda_.1} parent=0 // pred_check
    _
  $region15: #{_lambda_.1} parent=0 // pred_check_branch
    %17 = sbr.rel (0) target = $region17
  $region16: #{_lambda_.1} parent=0 // pred_region
    _
  $region17: #{_lambda_.1} parent=0 // pred_fallthru
    _
  // Predicated region
  $region18: #{_lambda_.1} parent=0 // pred_check
    _
  $region19: #{_lambda_.1} parent=0 // pred_check_branch
    %19 = sbr.rel (0) target = $region21
  $region20: #{_lambda_.1} parent=0 // pred_region
    _
  $region21: #{_lambda_.1} parent=0 // pred_fallthru
    _
  %v21 = vld [vmem:[%s0] sm:$0xf]
  %v22 = vld [vmem:[%s0 + $0x4] sm:$0xf]
  %v23 = vld [vmem:[%s0 + $0x8] sm:$0xf]
  %v24 = vld [vmem:[%s0 + $0xc] sm:$0xf]
  %v25 = vld [vmem:[%s0 + $0x10] sm:$0xf]
  %v26 = vld [vmem:[%s0 + $0x14] sm:$0xf]
  %v27 = vld [vmem:[%s0 + $0x18] sm:$0xf]
  %v28 = vld [vmem:[%s0 + $0x1c] sm:$0xf]
  %v29 = vld [vmem:[%s0 + $0x20] sm:$0xf]
  %v30 = vld [vmem:[%s0 + $0x24] sm:$0xf]
  %v31 = vld [vmem:[%s0 + $0x28] sm:$0xf]
  %v32 = vld [vmem:[%s0 + $0x2c] sm:$0xf]
  %v33 = vld [vmem:[%s0 + $0x30] sm:$0xf]
  %v34 = vld [vmem:[%s0 + $0x34] sm:$0xf]
  %v35 = vld [vmem:[%s0 + $0x38] sm:$0xf]
  %v36 = vld [vmem:[%s0 + $0x3c] sm:$0xf]
  %v37 = vld [vmem:[%s0 + $0x40] sm:$0xf]
  %v38 = vld [vmem:[%s0 + $0x44] sm:$0xf]
  %v39 = vld [vmem:[%s0 + $0x48] sm:$0xf]
  %v40 = vld [vmem:[%s0 + $0x4c] sm:$0xf]
  %v41 = vld [vmem:[%s0 + $0x50] sm:$0xf]
  %v42 = vld [vmem:[%s0 + $0x54] sm:$0xf]
  %v43 = vld [vmem:[%s0 + $0x58] sm:$0xf]
  %v44 = vld [vmem:[%s0 + $0x5c] sm:$0xf]
  %v45 = vld [vmem:[%s0 + $0x60] sm:$0xf]
  %v46 = vld [vmem:[%s0 + $0x64] sm:$0xf]
  %v47 = vld [vmem:[%s0 + $0x68] sm:$0xf]
  %v48 = vld [vmem:[%s0 + $0x6c] sm:$0xf]
  %v49 = vld [vmem:[%s0 + $0x70] sm:$0xf]
  %v50 = vld [vmem:[%s0 + $0x74] sm:$0xf]
  %v51 = vld [vmem:[%s0 + $0x78] sm:$0xf]
  %v52 = vld [vmem:[%s0 + $0x7c] sm:$0xf]
  %v53 = vld [vmem:[%s1] sm:$0xf]
  %v54 = vld [vmem:[%s2] sm:$0x1]
  %v56 = vperm.slane %v54, 0
  %v90 = vunpack.c.l.b16 %v21
  %v91 = vunpack.c.l.b16 %v22
  %v92 = vunpack.c.l.b16 %v23
  %v93 = vunpack.c.l.b16 %v24
  %v94 = vunpack.c.l.b16 %v25
  %v95 = vunpack.c.l.b16 %v26
  %v96 = vunpack.c.l.b16 %v27
  %v97 = vunpack.c.l.b16 %v28
  %v98 = vunpack.c.l.b16 %v29
  %v99 = vunpack.c.l.b16 %v30
  %v100 = vunpack.c.l.b16 %v31
  %v101 = vunpack.c.l.b16 %v32
  %v102 = vunpack.c.l.b16 %v33
  %v103 = vunpack.c.l.b16 %v34
  %v104 = vunpack.c.l.b16 %v35
  %v105 = vunpack.c.l.b16 %v36
  %v106 = vunpack.c.l.b16 %v37
  %v107 = vunpack.c.l.b16 %v38
  %v108 = vunpack.c.l.b16 %v39
  %v109 = vunpack.c.l.b16 %v40
  %v110 = vunpack.c.l.b16 %v41
  %v111 = vunpack.c.l.b16 %v42
  %v112 = vunpack.c.l.b16 %v43
  %v113 = vunpack.c.l.b16 %v44
  %v114 = vunpack.c.l.b16 %v45
  %v115 = vunpack.c.l.b16 %v46
  %v116 = vunpack.c.l.b16 %v47
  %v117 = vunpack.c.l.b16 %v48
  %v118 = vunpack.c.l.b16 %v49
  %v119 = vunpack.c.l.b16 %v50
  %v120 = vunpack.c.l.b16 %v51
  %v121 = vunpack.c.l.b16 %v52
  %v122 = vpack.c.b16 %v91, %v90
  %v123 = vpack.c.b16 %v93, %v92
  %v124 = vpack.c.b16 %v95, %v94
  %v125 = vpack.c.b16 %v97, %v96
  %v126 = vpack.c.b16 %v99, %v98
  %v127 = vpack.c.b16 %v101, %v100
  %v128 = vpack.c.b16 %v103, %v102
  %v129 = vpack.c.b16 %v105, %v104
  %v130 = vpack.c.b16 %v107, %v106
  %v131 = vpack.c.b16 %v109, %v108
  %v132 = vpack.c.b16 %v111, %v110
  %v133 = vpack.c.b16 %v113, %v112
  %v134 = vpack.c.b16 %v115, %v114
  %v135 = vpack.c.b16 %v117, %v116
  %v136 = vpack.c.b16 %v119, %v118
  %v137 = vpack.c.b16 %v121, %v120
  %vm138 = vcmask 64512
  %v140 = vsel %vm138, %v122, 0
  %v143 = vsel %vm138, %v123, 0
  %v146 = vsel %vm138, %v124, 0
  %v149 = vsel %vm138, %v125, 0
  %v152 = vsel %vm138, %v126, 0
  %v155 = vsel %vm138, %v127, 0
  %v158 = vsel %vm138, %v128, 0
  %v161 = vsel %vm138, %v129, 0
  %v164 = vsel %vm138, %v130, 0
  %v167 = vsel %vm138, %v131, 0
  %v170 = vsel %vm138, %v132, 0
  %v173 = vsel %vm138, %v133, 0
  %v176 = vsel %vm138, %v134, 0
  %v179 = vsel %vm138, %v135, 0
  %v182 = vsel %vm138, %v136, 0
  %v185 = vsel %vm138, %v137, 0
  %vm187 = vcmask 1043456
  %v189 = vsel %vm187, %v53, 0
  %191 = vmatpush.bf16.msra.mxu0 0
  %192 = vmatpush.bf16.msra.mxu0 0
  %193 = vmatpush.bf16.msra.mxu0 0
  %194 = vmatpush.bf16.msra.mxu0 0
  %195 = vmatpush.bf16.msra.mxu0 0
  %196 = vmatpush.bf16.msra.mxu0 0
  %197 = vmatpush.bf16.msra.mxu0 0
  %198 = vmatpush.bf16.msra.mxu0 %v189
  %199 = vmatmul.bf16.gmra.mxu0 %v140
  %v200 = vpop.f32.mrf.mxu0
  %v201 = vadd.f32 %v56, %v200
  %v202 = vpop.f32.mrf.mxu0
  %v203 = vadd.f32 %v56, %v202
  %204 = vmatmul.bf16.gmra.mxu0 %v143
  %v205 = vpop.f32.mrf.mxu0
  %v206 = vadd.f32 %v56, %v205
  %v207 = vpop.f32.mrf.mxu0
  %v208 = vadd.f32 %v56, %v207
  %209 = vmatmul.bf16.gmra.mxu0 %v146
  %v210 = vpop.f32.mrf.mxu0
  %v211 = vadd.f32 %v56, %v210
  %v212 = vpop.f32.mrf.mxu0
  %v213 = vadd.f32 %v56, %v212
  %214 = vmatmul.bf16.gmra.mxu0 %v149
  %v215 = vpop.f32.mrf.mxu0
  %v216 = vadd.f32 %v56, %v215
  %v217 = vpop.f32.mrf.mxu0
  %v218 = vadd.f32 %v56, %v217
  %219 = vmatmul.bf16.gmra.mxu0 %v152
  %v220 = vpop.f32.mrf.mxu0
  %v221 = vadd.f32 %v56, %v220
  %v222 = vpop.f32.mrf.mxu0
  %v223 = vadd.f32 %v56, %v222
  %224 = vmatmul.bf16.gmra.mxu0 %v155
  %v225 = vpop.f32.mrf.mxu0
  %v226 = vadd.f32 %v56, %v225
  %v227 = vpop.f32.mrf.mxu0
  %v228 = vadd.f32 %v56, %v227
  %229 = vmatmul.bf16.gmra.mxu0 %v158
  %v230 = vpop.f32.mrf.mxu0
  %v231 = vadd.f32 %v56, %v230
  %v232 = vpop.f32.mrf.mxu0
  %v233 = vadd.f32 %v56, %v232
  %234 = vmatmul.bf16.gmra.mxu0 %v161
  %v235 = vpop.f32.mrf.mxu0
  %v236 = vadd.f32 %v56, %v235
  %v237 = vpop.f32.mrf.mxu0
  %v238 = vadd.f32 %v56, %v237
  %239 = vmatmul.bf16.gmra.mxu0 %v164
  %v240 = vpop.f32.mrf.mxu0
  %v241 = vadd.f32 %v56, %v240
  %v242 = vpop.f32.mrf.mxu0
  %v243 = vadd.f32 %v56, %v242
  %244 = vmatmul.bf16.gmra.mxu0 %v167
  %v245 = vpop.f32.mrf.mxu0
  %v246 = vadd.f32 %v56, %v245
  %v247 = vpop.f32.mrf.mxu0
  %v248 = vadd.f32 %v56, %v247
  %249 = vmatmul.bf16.gmra.mxu0 %v170
  %v250 = vpop.f32.mrf.mxu0
  %v251 = vadd.f32 %v56, %v250
  %v252 = vpop.f32.mrf.mxu0
  %v253 = vadd.f32 %v56, %v252
  %254 = vmatmul.bf16.gmra.mxu0 %v173
  %v255 = vpop.f32.mrf.mxu0
  %v256 = vadd.f32 %v56, %v255
  %v257 = vpop.f32.mrf.mxu0
  %v258 = vadd.f32 %v56, %v257
  %259 = vmatmul.bf16.gmra.mxu0 %v176
  %v260 = vpop.f32.mrf.mxu0
  %v261 = vadd.f32 %v56, %v260
  %v262 = vpop.f32.mrf.mxu0
  %v263 = vadd.f32 %v56, %v262
  %264 = vmatmul.bf16.gmra.mxu0 %v179
  %v265 = vpop.f32.mrf.mxu0
  %v266 = vadd.f32 %v56, %v265
  %v267 = vpop.f32.mrf.mxu0
  %v268 = vadd.f32 %v56, %v267
  %269 = vmatmul.bf16.gmra.mxu0 %v182
  %v270 = vpop.f32.mrf.mxu0
  %v271 = vadd.f32 %v56, %v270
  %v272 = vpop.f32.mrf.mxu0
  %v273 = vadd.f32 %v56, %v272
  %274 = vmatmul.bf16.gmra.mxu0 %v185
  %v275 = vpop.f32.mrf.mxu0
  %v276 = vadd.f32 %v56, %v275
  %v277 = vpop.f32.mrf.mxu0
  %v278 = vadd.f32 %v56, %v277
  %279 = vdwg.mxu0
  %v280 = vmax.f32 %v201, 0.0
  %v281 = vmax.f32 %v203, 0.0
  %v282 = vmax.f32 %v206, 0.0
  %v283 = vmax.f32 %v208, 0.0
  %v284 = vmax.f32 %v211, 0.0
  %v285 = vmax.f32 %v213, 0.0
  %v286 = vmax.f32 %v216, 0.0
  %v287 = vmax.f32 %v218, 0.0
  %v288 = vmax.f32 %v221, 0.0
  %v289 = vmax.f32 %v223, 0.0
  %v290 = vmax.f32 %v226, 0.0
  %v291 = vmax.f32 %v228, 0.0
  %v292 = vmax.f32 %v231, 0.0
  %v293 = vmax.f32 %v233, 0.0
  %v294 = vmax.f32 %v236, 0.0
  %v295 = vmax.f32 %v238, 0.0
  %v296 = vmax.f32 %v241, 0.0
  %v297 = vmax.f32 %v243, 0.0
  %v298 = vmax.f32 %v246, 0.0
  %v299 = vmax.f32 %v248, 0.0
  %v300 = vmax.f32 %v251, 0.0
  %v301 = vmax.f32 %v253, 0.0
  %v302 = vmax.f32 %v256, 0.0
  %v303 = vmax.f32 %v258, 0.0
  %v304 = vmax.f32 %v261, 0.0
  %v305 = vmax.f32 %v263, 0.0
  %v306 = vmax.f32 %v266, 0.0
  %v307 = vmax.f32 %v268, 0.0
  %v308 = vmax.f32 %v271, 0.0
  %v309 = vmax.f32 %v273, 0.0
  %v310 = vmax.f32 %v276, 0.0
  %v311 = vmax.f32 %v278, 0.0
  %v312 = vpack.c.bf16 %v281, %v280
  %v313 = vpack.c.bf16 %v283, %v282
  %v314 = vpack.c.bf16 %v285, %v284
  %v315 = vpack.c.bf16 %v287, %v286
  %v316 = vpack.c.bf16 %v289, %v288
  %v317 = vpack.c.bf16 %v291, %v290
  %v318 = vpack.c.bf16 %v293, %v292
  %v319 = vpack.c.bf16 %v295, %v294
  %v320 = vpack.c.bf16 %v297, %v296
  %v321 = vpack.c.bf16 %v299, %v298
  %v322 = vpack.c.bf16 %v301, %v300
  %v323 = vpack.c.bf16 %v303, %v302
  %v324 = vpack.c.bf16 %v305, %v304
  %v325 = vpack.c.bf16 %v307, %v306
  %v326 = vpack.c.bf16 %v309, %v308
  %v327 = vpack.c.bf16 %v311, %v310
  %v328 = vld [vmem:[%s3] sm:$0xf]
  %v329 = vld [vmem:[%s3 + $0x4] sm:$0xf]
  %v330 = vld [vmem:[%s3 + $0x8] sm:$0xf]
  %v331 = vld [vmem:[%s3 + $0xc] sm:$0xf]
  %v332 = vld [vmem:[%s3 + $0x10] sm:$0xf]
  %v333 = vld [vmem:[%s3 + $0x14] sm:$0xf]
  %v334 = vld [vmem:[%s3 + $0x18] sm:$0xf]
  %v335 = vld [vmem:[%s3 + $0x1c] sm:$0xf]
  %v336 = vld [vmem:[%s3 + $0x20] sm:$0xf]
  %v337 = vld [vmem:[%s3 + $0x24] sm:$0xf]
  %v338 = vld [vmem:[%s3 + $0x28] sm:$0xf]
  %v339 = vld [vmem:[%s3 + $0x2c] sm:$0xf]
  %v340 = vld [vmem:[%s3 + $0x30] sm:$0xf]
  %v341 = vld [vmem:[%s3 + $0x34] sm:$0xf]
  %v342 = vld [vmem:[%s3 + $0x38] sm:$0xf]
  %v343 = vld [vmem:[%s3 + $0x3c] sm:$0xf]
  %v344 = vld [vmem:[%s4] sm:$0x1]
  %v361 = vunpack.c.l.b16 %v328
  %v362 = vunpack.c.l.b16 %v329
  %v363 = vunpack.c.l.b16 %v330
  %v364 = vunpack.c.l.b16 %v331
  %v365 = vunpack.c.l.b16 %v332
  %v366 = vunpack.c.l.b16 %v333
  %v367 = vunpack.c.l.b16 %v334
  %v368 = vunpack.c.l.b16 %v335
  %v369 = vunpack.c.l.b16 %v336
  %v370 = vunpack.c.l.b16 %v337
  %v371 = vunpack.c.l.b16 %v338
  %v372 = vunpack.c.l.b16 %v339
  %v373 = vunpack.c.l.b16 %v340
  %v374 = vunpack.c.l.b16 %v341
  %v375 = vunpack.c.l.b16 %v342
  %v376 = vunpack.c.l.b16 %v343
  %v377 = vpack.c.b16 %v362, %v361
  %v378 = vpack.c.b16 %v364, %v363
  %v379 = vpack.c.b16 %v366, %v365
  %v380 = vpack.c.b16 %v368, %v367
  %v381 = vpack.c.b16 %v370, %v369
  %v382 = vpack.c.b16 %v372, %v371
  %v383 = vpack.c.b16 %v374, %v373
  %v384 = vpack.c.b16 %v376, %v375
  %393 = vmatpush.bf16.msra.mxu0 %v384
  %394 = vmatpush.bf16.msra.mxu0 %v383
  %395 = vmatpush.bf16.msra.mxu0 %v382
  %396 = vmatpush.bf16.msra.mxu0 %v381
  %397 = vmatpush.bf16.msra.mxu0 %v380
  %398 = vmatpush.bf16.msra.mxu0 %v379
  %399 = vmatpush.bf16.msra.mxu0 %v378
  %400 = vmatpush.bf16.msra.mxu0 %v377
  %401 = vmatmul.bf16.gmra.mxu0 %v312
  %v402 = vpop.f32.mrf.mxu0
  %v403 = vadd.f32 0.0, %v402
  %v404 = vpop.f32.mrf.mxu0
  %v405 = vadd.f32 0.0, %v404
  %406 = vmatmul.bf16.gmra.mxu0 %v313
  %v407 = vpop.f32.mrf.mxu0
  %v408 = vadd.f32 0.0, %v407
  %v409 = vpop.f32.mrf.mxu0
  %v410 = vadd.f32 0.0, %v409
  %411 = vmatmul.bf16.gmra.mxu0 %v314
  %v412 = vpop.f32.mrf.mxu0
  %v413 = vadd.f32 0.0, %v412
  %v414 = vpop.f32.mrf.mxu0
  %v415 = vadd.f32 0.0, %v414
  %416 = vmatmul.bf16.gmra.mxu0 %v315
  %v417 = vpop.f32.mrf.mxu0
  %v418 = vadd.f32 0.0, %v417
  %v419 = vpop.f32.mrf.mxu0
  %v420 = vadd.f32 0.0, %v419
  %421 = vmatmul.bf16.gmra.mxu0 %v316
  %v422 = vpop.f32.mrf.mxu0
  %v423 = vadd.f32 0.0, %v422
  %v424 = vpop.f32.mrf.mxu0
  %v425 = vadd.f32 0.0, %v424
  %426 = vmatmul.bf16.gmra.mxu0 %v317
  %v427 = vpop.f32.mrf.mxu0
  %v428 = vadd.f32 0.0, %v427
  %v429 = vpop.f32.mrf.mxu0
  %v430 = vadd.f32 0.0, %v429
  %431 = vmatmul.bf16.gmra.mxu0 %v318
  %v432 = vpop.f32.mrf.mxu0
  %v433 = vadd.f32 0.0, %v432
  %v434 = vpop.f32.mrf.mxu0
  %v435 = vadd.f32 0.0, %v434
  %436 = vmatmul.bf16.gmra.mxu0 %v319
  %v437 = vpop.f32.mrf.mxu0
  %v438 = vadd.f32 0.0, %v437
  %v439 = vpop.f32.mrf.mxu0
  %v440 = vadd.f32 0.0, %v439
  %441 = vmatmul.bf16.gmra.mxu0 %v320
  %v442 = vpop.f32.mrf.mxu0
  %v443 = vadd.f32 0.0, %v442
  %v444 = vpop.f32.mrf.mxu0
  %v445 = vadd.f32 0.0, %v444
  %446 = vmatmul.bf16.gmra.mxu0 %v321
  %v447 = vpop.f32.mrf.mxu0
  %v448 = vadd.f32 0.0, %v447
  %v449 = vpop.f32.mrf.mxu0
  %v450 = vadd.f32 0.0, %v449
  %451 = vmatmul.bf16.gmra.mxu0 %v322
  %v452 = vpop.f32.mrf.mxu0
  %v453 = vadd.f32 0.0, %v452
  %v454 = vpop.f32.mrf.mxu0
  %v455 = vadd.f32 0.0, %v454
  %456 = vmatmul.bf16.gmra.mxu0 %v323
  %v457 = vpop.f32.mrf.mxu0
  %v458 = vadd.f32 0.0, %v457
  %v459 = vpop.f32.mrf.mxu0
  %v460 = vadd.f32 0.0, %v459
  %461 = vmatmul.bf16.gmra.mxu0 %v324
  %v462 = vpop.f32.mrf.mxu0
  %v463 = vadd.f32 0.0, %v462
  %v464 = vpop.f32.mrf.mxu0
  %v465 = vadd.f32 0.0, %v464
  %466 = vmatmul.bf16.gmra.mxu0 %v325
  %v467 = vpop.f32.mrf.mxu0
  %v468 = vadd.f32 0.0, %v467
  %v469 = vpop.f32.mrf.mxu0
  %v470 = vadd.f32 0.0, %v469
  %471 = vmatmul.bf16.gmra.mxu0 %v326
  %v472 = vpop.f32.mrf.mxu0
  %v473 = vadd.f32 0.0, %v472
  %v474 = vpop.f32.mrf.mxu0
  %v475 = vadd.f32 0.0, %v474
  %476 = vmatmul.bf16.gmra.mxu0 %v327
  %v477 = vpop.f32.mrf.mxu0
  %v478 = vadd.f32 0.0, %v477
  %v479 = vpop.f32.mrf.mxu0
  %v480 = vadd.f32 0.0, %v479
  %481 = vdwg.mxu0
  %v482 = vrot.slane %v403, 4
  %v483 = vmax.f32 %v403, %v482
  %v484 = vrot.slane %v483, 2
  %v485 = vmax.f32 %v483, %v484
  %v486 = vrot.slane %v485, 1
  %v487 = vmax.f32 %v485, %v486
  %v488 = vrot.slane %v405, 4
  %v489 = vmax.f32 %v405, %v488
  %v490 = vrot.slane %v489, 2
  %v491 = vmax.f32 %v489, %v490
  %v492 = vrot.slane %v491, 1
  %v493 = vmax.f32 %v491, %v492
  %v494 = vrot.slane %v408, 4
  %v495 = vmax.f32 %v408, %v494
  %v496 = vrot.slane %v495, 2
  %v497 = vmax.f32 %v495, %v496
  %v498 = vrot.slane %v497, 1
  %v499 = vmax.f32 %v497, %v498
  %v500 = vrot.slane %v410, 4
  %v501 = vmax.f32 %v410, %v500
  %v502 = vrot.slane %v501, 2
  %v503 = vmax.f32 %v501, %v502
  %v504 = vrot.slane %v503, 1
  %v505 = vmax.f32 %v503, %v504
  %v506 = vrot.slane %v413, 4
  %v507 = vmax.f32 %v413, %v506
  %v508 = vrot.slane %v507, 2
  %v509 = vmax.f32 %v507, %v508
  %v510 = vrot.slane %v509, 1
  %v511 = vmax.f32 %v509, %v510
  %v512 = vrot.slane %v415, 4
  %v513 = vmax.f32 %v415, %v512
  %v514 = vrot.slane %v513, 2
  %v515 = vmax.f32 %v513, %v514
  %v516 = vrot.slane %v515, 1
  %v517 = vmax.f32 %v515, %v516
  %v518 = vrot.slane %v418, 4
  %v519 = vmax.f32 %v418, %v518
  %v520 = vrot.slane %v519, 2
  %v521 = vmax.f32 %v519, %v520
  %v522 = vrot.slane %v521, 1
  %v523 = vmax.f32 %v521, %v522
  %v524 = vrot.slane %v420, 4
  %v525 = vmax.f32 %v420, %v524
  %v526 = vrot.slane %v525, 2
  %v527 = vmax.f32 %v525, %v526
  %v528 = vrot.slane %v527, 1
  %v529 = vmax.f32 %v527, %v528
  %v530 = vrot.slane %v423, 4
  %v531 = vmax.f32 %v423, %v530
  %v532 = vrot.slane %v531, 2
  %v533 = vmax.f32 %v531, %v532
  %v534 = vrot.slane %v533, 1
  %v535 = vmax.f32 %v533, %v534
  %v536 = vrot.slane %v425, 4
  %v537 = vmax.f32 %v425, %v536
  %v538 = vrot.slane %v537, 2
  %v539 = vmax.f32 %v537, %v538
  %v540 = vrot.slane %v539, 1
  %v541 = vmax.f32 %v539, %v540
  %v542 = vrot.slane %v428, 4
  %v543 = vmax.f32 %v428, %v542
  %v544 = vrot.slane %v543, 2
  %v545 = vmax.f32 %v543, %v544
  %v546 = vrot.slane %v545, 1
  %v547 = vmax.f32 %v545, %v546
  %v548 = vrot.slane %v430, 4
  %v549 = vmax.f32 %v430, %v548
  %v550 = vrot.slane %v549, 2
  %v551 = vmax.f32 %v549, %v550
  %v552 = vrot.slane %v551, 1
  %v553 = vmax.f32 %v551, %v552
  %v554 = vrot.slane %v433, 4
  %v555 = vmax.f32 %v433, %v554
  %v556 = vrot.slane %v555, 2
  %v557 = vmax.f32 %v555, %v556
  %v558 = vrot.slane %v557, 1
  %v559 = vmax.f32 %v557, %v558
  %v560 = vrot.slane %v435, 4
  %v561 = vmax.f32 %v435, %v560
  %v562 = vrot.slane %v561, 2
  %v563 = vmax.f32 %v561, %v562
  %v564 = vrot.slane %v563, 1
  %v565 = vmax.f32 %v563, %v564
  %v566 = vrot.slane %v438, 4
  %v567 = vmax.f32 %v438, %v566
  %v568 = vrot.slane %v567, 2
  %v569 = vmax.f32 %v567, %v568
  %v570 = vrot.slane %v569, 1
  %v571 = vmax.f32 %v569, %v570
  %v572 = vrot.slane %v440, 4
  %v573 = vmax.f32 %v440, %v572
  %v574 = vrot.slane %v573, 2
  %v575 = vmax.f32 %v573, %v574
  %v576 = vrot.slane %v575, 1
  %v577 = vmax.f32 %v575, %v576
  %v578 = vrot.slane %v443, 4
  %v579 = vmax.f32 %v443, %v578
  %v580 = vrot.slane %v579, 2
  %v581 = vmax.f32 %v579, %v580
  %v582 = vrot.slane %v581, 1
  %v583 = vmax.f32 %v581, %v582
  %v584 = vrot.slane %v445, 4
  %v585 = vmax.f32 %v445, %v584
  %v586 = vrot.slane %v585, 2
  %v587 = vmax.f32 %v585, %v586
  %v588 = vrot.slane %v587, 1
  %v589 = vmax.f32 %v587, %v588
  %v590 = vrot.slane %v448, 4
  %v591 = vmax.f32 %v448, %v590
  %v592 = vrot.slane %v591, 2
  %v593 = vmax.f32 %v591, %v592
  %v594 = vrot.slane %v593, 1
  %v595 = vmax.f32 %v593, %v594
  %v596 = vrot.slane %v450, 4
  %v597 = vmax.f32 %v450, %v596
  %v598 = vrot.slane %v597, 2
  %v599 = vmax.f32 %v597, %v598
  %v600 = vrot.slane %v599, 1
  %v601 = vmax.f32 %v599, %v600
  %v602 = vrot.slane %v453, 4
  %v603 = vmax.f32 %v453, %v602
  %v604 = vrot.slane %v603, 2
  %v605 = vmax.f32 %v603, %v604
  %v606 = vrot.slane %v605, 1
  %v607 = vmax.f32 %v605, %v606
  %v608 = vrot.slane %v455, 4
  %v609 = vmax.f32 %v455, %v608
  %v610 = vrot.slane %v609, 2
  %v611 = vmax.f32 %v609, %v610
  %v612 = vrot.slane %v611, 1
  %v613 = vmax.f32 %v611, %v612
  %v614 = vrot.slane %v458, 4
  %v615 = vmax.f32 %v458, %v614
  %v616 = vrot.slane %v615, 2
  %v617 = vmax.f32 %v615, %v616
  %v618 = vrot.slane %v617, 1
  %v619 = vmax.f32 %v617, %v618
  %v620 = vrot.slane %v460, 4
  %v621 = vmax.f32 %v460, %v620
  %v622 = vrot.slane %v621, 2
  %v623 = vmax.f32 %v621, %v622
  %v624 = vrot.slane %v623, 1
  %v625 = vmax.f32 %v623, %v624
  %v626 = vrot.slane %v463, 4
  %v627 = vmax.f32 %v463, %v626
  %v628 = vrot.slane %v627, 2
  %v629 = vmax.f32 %v627, %v628
  %v630 = vrot.slane %v629, 1
  %v631 = vmax.f32 %v629, %v630
  %v632 = vrot.slane %v465, 4
  %v633 = vmax.f32 %v465, %v632
  %v634 = vrot.slane %v633, 2
  %v635 = vmax.f32 %v633, %v634
  %v636 = vrot.slane %v635, 1
  %v637 = vmax.f32 %v635, %v636
  %v638 = vrot.slane %v468, 4
  %v639 = vmax.f32 %v468, %v638
  %v640 = vrot.slane %v639, 2
  %v641 = vmax.f32 %v639, %v640
  %v642 = vrot.slane %v641, 1
  %v643 = vmax.f32 %v641, %v642
  %v644 = vrot.slane %v470, 4
  %v645 = vmax.f32 %v470, %v644
  %v646 = vrot.slane %v645, 2
  %v647 = vmax.f32 %v645, %v646
  %v648 = vrot.slane %v647, 1
  %v649 = vmax.f32 %v647, %v648
  %v650 = vrot.slane %v473, 4
  %v651 = vmax.f32 %v473, %v650
  %v652 = vrot.slane %v651, 2
  %v653 = vmax.f32 %v651, %v652
  %v654 = vrot.slane %v653, 1
  %v655 = vmax.f32 %v653, %v654
  %v656 = vrot.slane %v475, 4
  %v657 = vmax.f32 %v475, %v656
  %v658 = vrot.slane %v657, 2
  %v659 = vmax.f32 %v657, %v658
  %v660 = vrot.slane %v659, 1
  %v661 = vmax.f32 %v659, %v660
  %v662 = vrot.slane %v478, 4
  %v663 = vmax.f32 %v478, %v662
  %v664 = vrot.slane %v663, 2
  %v665 = vmax.f32 %v663, %v664
  %v666 = vrot.slane %v665, 1
  %v667 = vmax.f32 %v665, %v666
  %v668 = vrot.slane %v480, 4
  %v669 = vmax.f32 %v480, %v668
  %v670 = vrot.slane %v669, 2
  %v671 = vmax.f32 %v669, %v670
  %v672 = vrot.slane %v671, 1
  %v673 = vmax.f32 %v671, %v672
  %v675 = vperm.slane %v344, 0
  %v677 = vadd.f32 %v487, %v675
  %v678 = vadd.f32 %v493, %v675
  %v679 = vadd.f32 %v499, %v675
  %v680 = vadd.f32 %v505, %v675
  %v681 = vadd.f32 %v511, %v675
  %v682 = vadd.f32 %v517, %v675
  %v683 = vadd.f32 %v523, %v675
  %v684 = vadd.f32 %v529, %v675
  %v685 = vadd.f32 %v535, %v675
  %v686 = vadd.f32 %v541, %v675
  %v687 = vadd.f32 %v547, %v675
  %v688 = vadd.f32 %v553, %v675
  %v689 = vadd.f32 %v559, %v675
  %v690 = vadd.f32 %v565, %v675
  %v691 = vadd.f32 %v571, %v675
  %v692 = vadd.f32 %v577, %v675
  %v693 = vadd.f32 %v583, %v675
  %v694 = vadd.f32 %v589, %v675
  %v695 = vadd.f32 %v595, %v675
  %v696 = vadd.f32 %v601, %v675
  %v697 = vadd.f32 %v607, %v675
  %v698 = vadd.f32 %v613, %v675
  %v699 = vadd.f32 %v619, %v675
  %v700 = vadd.f32 %v625, %v675
  %v701 = vadd.f32 %v631, %v675
  %v702 = vadd.f32 %v637, %v675
  %v703 = vadd.f32 %v643, %v675
  %v704 = vadd.f32 %v649, %v675
  %v705 = vadd.f32 %v655, %v675
  %v706 = vadd.f32 %v661, %v675
  %v707 = vadd.f32 %v667, %v675
  %v708 = vadd.f32 %v673, %v675
  %v709 = vmax.f32 %v677, 0.0
  %v710 = vmax.f32 %v678, 0.0
  %v711 = vmax.f32 %v679, 0.0
  %v712 = vmax.f32 %v680, 0.0
  %v713 = vmax.f32 %v681, 0.0
  %v714 = vmax.f32 %v682, 0.0
  %v715 = vmax.f32 %v683, 0.0
  %v716 = vmax.f32 %v684, 0.0
  %v717 = vmax.f32 %v685, 0.0
  %v718 = vmax.f32 %v686, 0.0
  %v719 = vmax.f32 %v687, 0.0
  %v720 = vmax.f32 %v688, 0.0
  %v721 = vmax.f32 %v689, 0.0
  %v722 = vmax.f32 %v690, 0.0
  %v723 = vmax.f32 %v691, 0.0
  %v724 = vmax.f32 %v692, 0.0
  %v725 = vmax.f32 %v693, 0.0
  %v726 = vmax.f32 %v694, 0.0
  %v727 = vmax.f32 %v695, 0.0
  %v728 = vmax.f32 %v696, 0.0
  %v729 = vmax.f32 %v697, 0.0
  %v730 = vmax.f32 %v698, 0.0
  %v731 = vmax.f32 %v699, 0.0
  %v732 = vmax.f32 %v700, 0.0
  %v733 = vmax.f32 %v701, 0.0
  %v734 = vmax.f32 %v702, 0.0
  %v735 = vmax.f32 %v703, 0.0
  %v736 = vmax.f32 %v704, 0.0
  %v737 = vmax.f32 %v705, 0.0
  %v738 = vmax.f32 %v706, 0.0
  %v739 = vmax.f32 %v707, 0.0
  %v740 = vmax.f32 %v708, 0.0
  %v741 = vpack.c.bf16 %v709, %v709
  %v742 = vpack.c.bf16 %v710, %v710
  %v743 = vpack.c.bf16 %v711, %v711
  %v744 = vpack.c.bf16 %v712, %v712
  %v745 = vpack.c.bf16 %v713, %v713
  %v746 = vpack.c.bf16 %v714, %v714
  %v747 = vpack.c.bf16 %v715, %v715
  %v748 = vpack.c.bf16 %v716, %v716
  %v749 = vpack.c.bf16 %v717, %v717
  %v750 = vpack.c.bf16 %v718, %v718
  %v751 = vpack.c.bf16 %v719, %v719
  %v752 = vpack.c.bf16 %v720, %v720
  %v753 = vpack.c.bf16 %v721, %v721
  %v754 = vpack.c.bf16 %v722, %v722
  %v755 = vpack.c.bf16 %v723, %v723
  %v756 = vpack.c.bf16 %v724, %v724
  %v757 = vpack.c.bf16 %v725, %v725
  %v758 = vpack.c.bf16 %v726, %v726
  %v759 = vpack.c.bf16 %v727, %v727
  %v760 = vpack.c.bf16 %v728, %v728
  %v761 = vpack.c.bf16 %v729, %v729
  %v762 = vpack.c.bf16 %v730, %v730
  %v763 = vpack.c.bf16 %v731, %v731
  %v764 = vpack.c.bf16 %v732, %v732
  %v765 = vpack.c.bf16 %v733, %v733
  %v766 = vpack.c.bf16 %v734, %v734
  %v767 = vpack.c.bf16 %v735, %v735
  %v768 = vpack.c.bf16 %v736, %v736
  %v769 = vpack.c.bf16 %v737, %v737
  %v770 = vpack.c.bf16 %v738, %v738
  %v771 = vpack.c.bf16 %v739, %v739
  %v772 = vpack.c.bf16 %v740, %v740
  %v805 = vunpack.c.l.b16 %v741
  %v806 = vunpack.c.l.b16 %v742
  %v807 = vunpack.c.l.b16 %v743
  %v808 = vunpack.c.l.b16 %v744
  %v809 = vunpack.c.l.b16 %v745
  %v810 = vunpack.c.l.b16 %v746
  %v811 = vunpack.c.l.b16 %v747
  %v812 = vunpack.c.l.b16 %v748
  %v813 = vunpack.c.l.b16 %v749
  %v814 = vunpack.c.l.b16 %v750
  %v815 = vunpack.c.l.b16 %v751
  %v816 = vunpack.c.l.b16 %v752
  %v817 = vunpack.c.l.b16 %v753
  %v818 = vunpack.c.l.b16 %v754
  %v819 = vunpack.c.l.b16 %v755
  %v820 = vunpack.c.l.b16 %v756
  %v821 = vunpack.c.l.b16 %v757
  %v822 = vunpack.c.l.b16 %v758
  %v823 = vunpack.c.l.b16 %v759
  %v824 = vunpack.c.l.b16 %v760
  %v825 = vunpack.c.l.b16 %v761
  %v826 = vunpack.c.l.b16 %v762
  %v827 = vunpack.c.l.b16 %v763
  %v828 = vunpack.c.l.b16 %v764
  %v829 = vunpack.c.l.b16 %v765
  %v830 = vunpack.c.l.b16 %v766
  %v831 = vunpack.c.l.b16 %v767
  %v832 = vunpack.c.l.b16 %v768
  %v833 = vunpack.c.l.b16 %v769
  %v834 = vunpack.c.l.b16 %v770
  %v835 = vunpack.c.l.b16 %v771
  %v836 = vunpack.c.l.b16 %v772
  %v837 = vrot.slane %v806, 7
  %vm838 = vcmask 1041409
  %v839 = vsel %vm838, %v837, %v805
  %v840 = vrot.slane %v807, 6
  %vm841 = vcmask 1042434
  %v842 = vsel %vm841, %v840, %v839
  %v843 = vrot.slane %v808, 5
  %vm844 = vcmask 1043459
  %v845 = vsel %vm844, %v843, %v842
  %v846 = vrot.slane %v809, 4
  %vm847 = vcmask 1044484
  %v848 = vsel %vm847, %v846, %v845
  %v849 = vrot.slane %v810, 3
  %vm850 = vcmask 1045509
  %v851 = vsel %vm850, %v849, %v848
  %v852 = vrot.slane %v811, 2
  %vm853 = vcmask 1046534
  %v854 = vsel %vm853, %v852, %v851
  %v855 = vrot.slane %v812, 1
  %vm856 = vcmask 1047559
  %v857 = vsel %vm856, %v855, %v854
  %v858 = vrot.slane %v814, 7
  %v859 = vsel %vm838, %v858, %v813
  %v860 = vrot.slane %v815, 6
  %v861 = vsel %vm841, %v860, %v859
  %v862 = vrot.slane %v816, 5
  %v863 = vsel %vm844, %v862, %v861
  %v864 = vrot.slane %v817, 4
  %v865 = vsel %vm847, %v864, %v863
  %v866 = vrot.slane %v818, 3
  %v867 = vsel %vm850, %v866, %v865
  %v868 = vrot.slane %v819, 2
  %v869 = vsel %vm853, %v868, %v867
  %v870 = vrot.slane %v820, 1
  %v871 = vsel %vm856, %v870, %v869
  %v872 = vrot.slane %v822, 7
  %v873 = vsel %vm838, %v872, %v821
  %v874 = vrot.slane %v823, 6
  %v875 = vsel %vm841, %v874, %v873
  %v876 = vrot.slane %v824, 5
  %v877 = vsel %vm844, %v876, %v875
  %v878 = vrot.slane %v825, 4
  %v879 = vsel %vm847, %v878, %v877
  %v880 = vrot.slane %v826, 3
  %v881 = vsel %vm850, %v880, %v879
  %v882 = vrot.slane %v827, 2
  %v883 = vsel %vm853, %v882, %v881
  %v884 = vrot.slane %v828, 1
  %v885 = vsel %vm856, %v884, %v883
  %v886 = vrot.slane %v830, 7
  %v887 = vsel %vm838, %v886, %v829
  %v888 = vrot.slane %v831, 6
  %v889 = vsel %vm841, %v888, %v887
  %v890 = vrot.slane %v832, 5
  %v891 = vsel %vm844, %v890, %v889
  %v892 = vrot.slane %v833, 4
  %v893 = vsel %vm847, %v892, %v891
  %v894 = vrot.slane %v834, 3
  %v895 = vsel %vm850, %v894, %v893
  %v896 = vrot.slane %v835, 2
  %v897 = vsel %vm853, %v896, %v895
  %v898 = vrot.slane %v836, 1
  %v899 = vsel %vm856, %v898, %v897
  %v900 = vpack.c.b16 %v857, %v857
  %v901 = vpack.c.b16 %v871, %v871
  %v902 = vpack.c.b16 %v885, %v885
  %v903 = vpack.c.b16 %v899, %v899
  %908 = vst [vmem:[%s5] sm:$0xf] %v900
  %909 = vst [vmem:[%s5 + $0x4] sm:$0xf] %v901
  %910 = vst [vmem:[%s5 + $0x8] sm:$0xf] %v902
  %911 = vst [vmem:[%s5 + $0xc] sm:$0xf] %v903
  // Predicated region
  $region22: #{_lambda_.1} parent=0 // pred_check
    _
  $region23: #{_lambda_.1} parent=0 // pred_check_branch
    %913 = sbr.rel (0) target = $region25
  $region24: #{_lambda_.1} parent=0 // pred_region
    _
  $region25: #{_lambda_.1} parent=0 // pred_fallthru
    _
  // Predicated region
  $region26: #{_lambda_.1} parent=0 // pred_check
    _
  $region27: #{_lambda_.1} parent=0 // pred_check_branch
    %915 = sbr.rel (0) target = $region29
  $region28: #{_lambda_.1} parent=0 // pred_region
    _
  $region29: #{_lambda_.1} parent=0 // pred_fallthru
    _

</llo_original>
